<compile_context>
chip_gen: v7x
topology: tpu7x:2x2x1
jax: 0.10.0
libtpu: 0.0.40
codegen_flags: <defaults>
</compile_context>

<pallas_src>
import functools

import jax
import jax.numpy as jnp
from jax.experimental import pallas as pl
from jax.experimental.pallas import tpu as pltpu


# ---------------------------------------------------------------------------
# Kernels
# ---------------------------------------------------------------------------

def _value_net_kernel_fused(x_ref, w1_ref, b12_ref, w2_ref, w3_ref, b3_ref,
                            o_ref):
    """One batch tile, concat already fused: linear->relu->linear->relu->linear."""
    w_dtype = w2_ref.dtype

    x = x_ref[...].astype(w_dtype)                                      # [TB, D]

    # Layer 1: single MXU matmul (D <= 128), f32 accumulation.
    h1 = jnp.dot(x, w1_ref[...], preferred_element_type=jnp.float32)   # [TB, H]
    h1 = jnp.maximum(h1 + b12_ref[0:1, :], 0.0)
    h1 = h1.astype(w_dtype)            # drop the f32 copy before the next dot

    # Layer 2.
    h2 = jnp.dot(h1, w2_ref[...], preferred_element_type=jnp.float32)  # [TB, H]
    h2 = jnp.maximum(h2 + b12_ref[1:2, :], 0.0)

    # Layer 3 (out_features == 1): VPU multiply + cross-lane reduce.
    out = jnp.sum(h2 * w3_ref[...], axis=-1, keepdims=True)            # [TB, 1]
    o_ref[...] = (out + b3_ref[0, 0]).astype(o_ref.dtype)


def _value_net_kernel_split(s_ref, a_ref, bvec_ref, w1s_ref, w1a_ref, w1b_ref,
                            b12_ref, w2_ref, w3_ref, b3_ref, o_ref):
    """Large-D variant: the concat is fused as a 3-way row-split of W1."""
    w_dtype = w2_ref.dtype

    s = s_ref[...].astype(w_dtype)
    a = a_ref[...].astype(w_dtype)
    bv = bvec_ref[...].astype(w_dtype)

    h1 = jnp.dot(s, w1s_ref[...], preferred_element_type=jnp.float32)
    h1 = h1 + jnp.dot(a, w1a_ref[...], preferred_element_type=jnp.float32)
    h1 = h1 + jnp.dot(bv, w1b_ref[...], preferred_element_type=jnp.float32)
    h1 = jnp.maximum(h1 + b12_ref[0:1, :], 0.0).astype(w_dtype)

    h2 = jnp.dot(h1, w2_ref[...], preferred_element_type=jnp.float32)
    h2 = jnp.maximum(h2 + b12_ref[1:2, :], 0.0)

    out = jnp.sum(h2 * w3_ref[...], axis=-1, keepdims=True)
    o_ref[...] = (out + b3_ref[0, 0]).astype(o_ref.dtype)


# ---------------------------------------------------------------------------
# Wrapper
# ---------------------------------------------------------------------------

def _round_up(x, m):
    return (x + m - 1) // m * m


def _device_kind():
    try:
        return jax.devices()[0].device_kind.lower()
    except Exception:
        return ""


@functools.partial(jax.jit, static_argnames=("tile_b",))
def value_network_forward(state, action, b, params, *, tile_b=None):
    """Pallas implementation of ValueNetwork.forward.

    state:  [B, obs_dim]     float32
    action: [B, action_dim]  float32
    b:      [B, num_vertex]  float32
    params: dict with w1 [D,H], b1 [1,H], w2 [H,H], b2 [1,H], w3 [H,1], b3 [1,1]
            (f32 or bf16 weight storage -- bf16 is recommended on all
            generations; accumulation is always f32)
    returns [B, 1] float32
    """
    B, obs_dim = state.shape
    action_dim = action.shape[1]
    num_vertex = b.shape[1]
    D = obs_dim + action_dim + num_vertex
    H = params["w2"].shape[0]

    kind = _device_kind()
    is_v7 = "7" in kind
    if tile_b is None:
        # v5-class chips: 128x128 MXU and tighter vreg budget -> tb=128.
        tile_b = 128 if "v5" in kind else 512
    tile_b = max(8, int(tile_b))

    # Even split of B into tiles (padding waste < 8 rows per tile).
    n_tiles = max(1, -(-B // tile_b))
    if is_v7 and n_tiles == 1 and B > 128:
        n_tiles = 2                      # keep both v7x TensorCores busy
    tb = _round_up(-(-B // n_tiles), 8)
    B_pad = tb * n_tiles
    grid = (n_tiles,)

    # Biases in f32 (bias-add / ReLU stay f32 everywhere; b3 lives in SMEM).
    b12 = jnp.concatenate((params["b1"], params["b2"]), axis=0).astype(jnp.float32)
    b3 = params["b3"].astype(jnp.float32)                   # [1, 1] scalar
    w3_row = params["w3"].T.astype(jnp.float32)             # [1, H] for VPU reduce

    flops = 2 * B_pad * H * (D + H + 1)

    compiler_params = pltpu.CompilerParams(dimension_semantics=("parallel",))

    def full_spec(shape):
        # Same whole block every grid step (weights / biases stay resident).
        return pl.BlockSpec(shape, lambda i: (0, 0))

    smem_spec = pl.BlockSpec(memory_space=pltpu.MemorySpace.SMEM)

    if D <= 128:
        # Single-matmul layer 1: concat in the wrapper (negligible at small D).
        x = jnp.concatenate((state, action, b), axis=1)     # [B, D]
        if B_pad != B:
            x = jnp.pad(x, ((0, B_pad - B), (0, 0)))

        bytes_accessed = (
            x.size * x.dtype.itemsize
            + params["w1"].size * params["w1"].dtype.itemsize
            + params["w2"].size * params["w2"].dtype.itemsize
            + w3_row.size * 4 + b12.size * 4 + b3.size * 4
            + B_pad * 4)

        out = pl.pallas_call(
            _value_net_kernel_fused,
            out_shape=jax.ShapeDtypeStruct((B_pad, 1), jnp.float32),
            grid=grid,
            in_specs=[
                pl.BlockSpec((tb, D), lambda i: (i, 0)),     # fused input tile
                full_spec((D, H)),                           # w1 (whole)
                full_spec((2, H)),                           # b1 / b2 merged
                full_spec((H, H)),                           # w2
                full_spec((1, H)),                           # w3 row
                smem_spec,                                   # b3 scalar
            ],
            out_specs=pl.BlockSpec((tb, 1), lambda i: (i, 0)),
            compiler_params=compiler_params,
            cost_estimate=pl.CostEstimate(
                flops=int(flops), transcendentals=0,
                bytes_accessed=int(bytes_accessed)),
        )(x, params["w1"], b12, params["w2"], w3_row, b3)
    else:
        # Large D: keep the 3-way row-split of W1 so the concat never hits HBM.
        if B_pad != B:
            pad = ((0, B_pad - B), (0, 0))
            state = jnp.pad(state, pad)
            action = jnp.pad(action, pad)
            b = jnp.pad(b, pad)

        w1 = params["w1"]
        w1_s = w1[:obs_dim]
        w1_a = w1[obs_dim:obs_dim + action_dim]
        w1_b = w1[obs_dim + action_dim:]

        bytes_accessed = (
            (state.size + action.size + b.size) * state.dtype.itemsize
            + w1.size * w1.dtype.itemsize
            + params["w2"].size * params["w2"].dtype.itemsize
            + w3_row.size * 4 + b12.size * 4 + b3.size * 4
            + B_pad * 4)

        out = pl.pallas_call(
            _value_net_kernel_split,
            out_shape=jax.ShapeDtypeStruct((B_pad, 1), jnp.float32),
            grid=grid,
            in_specs=[
                pl.BlockSpec((tb, obs_dim), lambda i: (i, 0)),
                pl.BlockSpec((tb, action_dim), lambda i: (i, 0)),
                pl.BlockSpec((tb, num_vertex), lambda i: (i, 0)),
                full_spec((obs_dim, H)),
                full_spec((action_dim, H)),
                full_spec((num_vertex, H)),
                full_spec((2, H)),
                full_spec((H, H)),
                full_spec((1, H)),
                smem_spec,
            ],
            out_specs=pl.BlockSpec((tb, 1), lambda i: (i, 0)),
            compiler_params=compiler_params,
            cost_estimate=pl.CostEstimate(
                flops=int(flops), transcendentals=0,
                bytes_accessed=int(bytes_accessed)),
        )(state, action, b, w1_s, w1_a, w1_b, b12, params["w2"], w3_row, b3)

    return out[:B]


# ---------------------------------------------------------------------------
# Params / reference
# ---------------------------------------------------------------------------

def init_value_network_params(key, obs_dim, action_dim, num_vertex, hidden_dim,
                              init_w=0.003):
    """Deterministic init matching the PyTorch module's shapes/init scheme."""
    D = obs_dim + action_dim + num_vertex
    k1, k2, k3, k4, k5, k6 = jax.random.split(key, 6)

    def torch_linear_init(kw, kb, fan_in, fan_out):
        # nn.Linear default: U(-1/sqrt(fan_in), 1/sqrt(fan_in))
        bound = 1.0 / jnp.sqrt(jnp.asarray(fan_in, jnp.float32))
        w = jax.random.uniform(kw, (fan_in, fan_out), jnp.float32, -bound, bound)
        bias = jax.random.uniform(kb, (1, fan_out), jnp.float32, -bound, bound)
        return w, bias

    w1, b1 = torch_linear_init(k1, k2, D, hidden_dim)
    w2, b2 = torch_linear_init(k3, k4, hidden_dim, hidden_dim)
    # linear3 uses uniform_(-init_w, init_w)
    w3 = jax.random.uniform(k5, (hidden_dim, 1), jnp.float32, -init_w, init_w)
    b3 = jax.random.uniform(k6, (1, 1), jnp.float32, -init_w, init_w)
    return dict(w1=w1, b1=b1, w2=w2, b2=b2, w3=w3, b3=b3)


def cast_params(params, dtype):
    # bf16 weight storage is recommended on all generations (v5e included);
    # accumulation and bias/ReLU stay f32 in the kernel regardless.
    return {k: v.astype(dtype) for k, v in params.items()}


def _reference_forward(state, action, b, params):
    x = jnp.concatenate((state, action, b), axis=1)
    h1 = jax.nn.relu(x @ params["w1"] + params["b1"])
    h2 = jax.nn.relu(h1 @ params["w2"] + params["b2"])
    return h2 @ params["w3"] + params["b3"]


# ---------------------------------------------------------------------------
# Self-test
# ---------------------------------------------------------------------------

if __name__ == "__main__":
    key = jax.random.PRNGKey(0)
    k_state, k_action, k_b, k_params, k2_in, k2_params = jax.random.split(key, 6)

    # --- Config A: small D (fused single-matmul layer 1), batch not a tile
    # multiple to exercise the even-split padding path. -----------------------
    batch = 300
    obs_dim, action_dim, num_vertex, hidden_dim = 8, 4, 4, 128

    state = jax.random.normal(k_state, (batch, obs_dim), jnp.float32)
    action = jax.random.normal(k_action, (batch, action_dim), jnp.float32)
    b_in = jax.random.normal(k_b, (batch, num_vertex), jnp.float32)
    params = init_value_network_params(k_params, obs_dim, action_dim,
                                       num_vertex, hidden_dim)
    ref = _reference_forward(state, action, b_in, params)

    # f32 weights, default (per-generation) tile size.
    out = jax.block_until_ready(value_network_forward(state, action, b_in, params))
    assert out.shape == (batch, 1)
    assert jnp.allclose(out, ref, atol=1e-4, rtol=1e-4), "f32 mismatch vs reference"

    # f32 weights, forced multi-tile grid (tile_b=256 -> grid=(2,), tb=152).
    out2 = jax.block_until_ready(
        value_network_forward(state, action, b_in, params, tile_b=256))
    assert jnp.allclose(out2, ref, atol=1e-4, rtol=1e-4), "multi-tile mismatch"

    # bf16 weight storage with f32 accumulation.
    params_bf16 = cast_params(params, jnp.bfloat16)
    out_bf16 = jax.block_until_ready(
        value_network_forward(state, action, b_in, params_bf16))
    assert out_bf16.shape == (batch, 1)
    assert bool(jnp.all(jnp.isfinite(out_bf16)))
    assert jnp.allclose(out_bf16, ref, atol=2e-2), "bf16 mismatch vs f32 reference"

    # --- Config B: D > 128 exercises the 3-way split path. -------------------
    obs2, act2, nv2, hid2 = 100, 20, 40, 128          # D = 160 > 128
    batch2 = 48
    ks, ka, kb2 = jax.random.split(k2_in, 3)
    state2 = jax.random.normal(ks, (batch2, obs2), jnp.float32)
    action2 = jax.random.normal(ka, (batch2, act2), jnp.float32)
    b2_in = jax.random.normal(kb2, (batch2, nv2), jnp.float32)
    params2 = init_value_network_params(k2_params, obs2, act2, nv2, hid2)
    ref2 = _reference_forward(state2, action2, b2_in, params2)

    out_split = jax.block_until_ready(
        value_network_forward(state2, action2, b2_in, params2))
    assert out_split.shape == (batch2, 1)
    assert jnp.allclose(out_split, ref2, atol=1e-4, rtol=1e-4), "split-path mismatch"

    print("KERNEL_OK")
</pallas_src>

<mosaic_0001>
module attributes {stable_mosaic.version = 11 : i64} {
  func.func @_value_net_kernel_fused(%arg0: i32, %arg1: memref<304x16xf32, #tpu.memory_space<vmem>>, %arg2: memref<16x128xf32, #tpu.memory_space<vmem>>, %arg3: memref<2x128xf32, #tpu.memory_space<vmem>>, %arg4: memref<128x128xf32, #tpu.memory_space<vmem>>, %arg5: memref<1x128xf32, #tpu.memory_space<vmem>>, %arg6: memref<1x1xf32, #tpu.memory_space<smem>>, %arg7: memref<304x1xf32, #tpu.memory_space<vmem>>) attributes {dimension_semantics = [#tpu.dimension_semantics<parallel>], iteration_bounds = array<i64: 1>, scalar_prefetch = 0 : i64, scratch_operands = 0 : i64, tpu.core_type = #tpu.core_type<tc>, window_params = [{transform_indices = @transform_0, window_bounds = array<i64: 304, 16>}, {pipeline_mode = #tpu.pipeline_mode<synchronous>, transform_indices = @transform_1, window_bounds = array<i64: 16, 128>}, {pipeline_mode = #tpu.pipeline_mode<synchronous>, transform_indices = @transform_2, window_bounds = array<i64: 2, 128>}, {pipeline_mode = #tpu.pipeline_mode<synchronous>, transform_indices = @transform_3, window_bounds = array<i64: 128, 128>}, {pipeline_mode = #tpu.pipeline_mode<synchronous>, transform_indices = @transform_4, window_bounds = array<i64: 1, 128>}, {transform_indices = @transform_5, window_bounds = array<i64: 1, 1>}, {transform_indices = @transform_6, window_bounds = array<i64: 304, 1>}]} {
    %c0 = arith.constant 0 : index
    %c0_0 = arith.constant 0 : index
    %0 = vector.load %arg1[%c0, %c0_0] : memref<304x16xf32, #tpu.memory_space<vmem>>, vector<304x16xf32>
    %c0_1 = arith.constant 0 : index
    %c0_2 = arith.constant 0 : index
    %1 = vector.load %arg2[%c0_1, %c0_2] : memref<16x128xf32, #tpu.memory_space<vmem>>, vector<16x128xf32>
    %cst = arith.constant dense<0.000000e+00> : vector<304x128xf32>
    %2 = tpu.matmul %0, %1, %cst {dimension_numbers = #tpu.dot_dimension_numbers<[1], [0], [0], [1], [0, 0, 1, 1], [], []>} : vector<304x16xf32>, vector<16x128xf32>, vector<304x128xf32> -> vector<304x128xf32>
    %c0_3 = arith.constant 0 : index
    %c0_4 = arith.constant 0 : index
    %3 = vector.load %arg3[%c0_3, %c0_4] : memref<2x128xf32, #tpu.memory_space<vmem>>, vector<1x128xf32>
    %4 = vector.broadcast %3 : vector<1x128xf32> to vector<304x128xf32>
    %5 = arith.addf %2, %4 : vector<304x128xf32>
    %cst_5 = arith.constant 0.000000e+00 : f32
    %6 = vector.broadcast %cst_5 : f32 to vector<304x128xf32>
    %7 = arith.maximumf %5, %6 : vector<304x128xf32>
    %c0_6 = arith.constant 0 : index
    %c0_7 = arith.constant 0 : index
    %8 = vector.load %arg4[%c0_6, %c0_7] : memref<128x128xf32, #tpu.memory_space<vmem>>, vector<128x128xf32>
    %cst_8 = arith.constant dense<0.000000e+00> : vector<304x128xf32>
    %9 = tpu.matmul %7, %8, %cst_8 {dimension_numbers = #tpu.dot_dimension_numbers<[1], [0], [0], [1], [0, 0, 1, 1], [], []>} : vector<304x128xf32>, vector<128x128xf32>, vector<304x128xf32> -> vector<304x128xf32>
    %c1 = arith.constant 1 : index
    %c0_9 = arith.constant 0 : index
    %10 = vector.load %arg3[%c1, %c0_9] : memref<2x128xf32, #tpu.memory_space<vmem>>, vector<1x128xf32>
    %11 = vector.broadcast %10 : vector<1x128xf32> to vector<304x128xf32>
    %12 = arith.addf %9, %11 : vector<304x128xf32>
    %cst_10 = arith.constant 0.000000e+00 : f32
    %13 = vector.broadcast %cst_10 : f32 to vector<304x128xf32>
    %14 = arith.maximumf %12, %13 : vector<304x128xf32>
    %c0_11 = arith.constant 0 : index
    %c0_12 = arith.constant 0 : index
    %15 = vector.load %arg5[%c0_11, %c0_12] : memref<1x128xf32, #tpu.memory_space<vmem>>, vector<1x128xf32>
    %16 = vector.broadcast %15 : vector<1x128xf32> to vector<304x128xf32>
    %17 = arith.mulf %14, %16 : vector<304x128xf32>
    %cst_13 = arith.constant dense<0.000000e+00> : vector<304xf32>
    %18 = vector.multi_reduction <add>, %17, %cst_13 [1] : vector<304x128xf32> to vector<304xf32>
    %19 = vector.shape_cast %18 : vector<304xf32> to vector<304x1xf32>
    %c0_14 = arith.constant 0 : index
    %c0_15 = arith.constant 0 : index
    %20 = memref.load %arg6[%c0_14, %c0_15] : memref<1x1xf32, #tpu.memory_space<smem>>
    %21 = vector.broadcast %20 : f32 to vector<304x1xf32>
    %22 = arith.addf %19, %21 : vector<304x1xf32>
    %c0_16 = arith.constant 0 : index
    %c0_17 = arith.constant 0 : index
    %23 = vector.load %arg7[%c0_16, %c0_17] : memref<304x1xf32, #tpu.memory_space<vmem>>, vector<304x1xf32>
    tpu.vector_store %arg7[%c0_16, %c0_17], %22 {strides = array<i32>} : memref<304x1xf32, #tpu.memory_space<vmem>>, vector<304x1xf32>,
    return
  }
  func.func @transform_0(%arg0: i32) -> (i32, i32) {
    %c0_i32 = arith.constant 0 : i32
    %c0_i32_0 = arith.constant 0 : i32
    return %arg0, %c0_i32 : i32, i32
  }
  func.func @transform_1(%arg0: i32) -> (i32, i32) {
    %c0_i32 = arith.constant 0 : i32
    %c0_i32_0 = arith.constant 0 : i32
    %c0_i32_1 = arith.constant 0 : i32
    return %c0_i32, %c0_i32_0 : i32, i32
  }
  func.func @transform_2(%arg0: i32) -> (i32, i32) {
    %c0_i32 = arith.constant 0 : i32
    %c0_i32_0 = arith.constant 0 : i32
    %c0_i32_1 = arith.constant 0 : i32
    return %c0_i32, %c0_i32_0 : i32, i32
  }
  func.func @transform_3(%arg0: i32) -> (i32, i32) {
    %c0_i32 = arith.constant 0 : i32
    %c0_i32_0 = arith.constant 0 : i32
    %c0_i32_1 = arith.constant 0 : i32
    return %c0_i32, %c0_i32_0 : i32, i32
  }
  func.func @transform_4(%arg0: i32) -> (i32, i32) {
    %c0_i32 = arith.constant 0 : i32
    %c0_i32_0 = arith.constant 0 : i32
    %c0_i32_1 = arith.constant 0 : i32
    return %c0_i32, %c0_i32_0 : i32, i32
  }
  func.func @transform_5(%arg0: i32) -> (i32, i32) {
    %c0_i32 = arith.constant 0 : i32
    %c0_i32_0 = arith.constant 0 : i32
    %c0_i32_1 = arith.constant 0 : i32
    return %c0_i32, %c0_i32_0 : i32, i32
  }
  func.func @transform_6(%arg0: i32) -> (i32, i32) {
    %c0_i32 = arith.constant 0 : i32
    %c0_i32_0 = arith.constant 0 : i32
    return %arg0, %c0_i32 : i32, i32
  }
}

</mosaic_0001>

<llo_original>
// kernel: value_network_forward.1
$region0: #{value_network_forward.1}
  #allocation0 [shape = 'u32[]', space=smem, size = 0x4, offset = 0x4, fixed_abs, tag = 'smem constant byte address 0x4 - core index']
  #allocation1 [shape = 'u32[144,128]{1,0:T(1,128)}', space=vmem, size = 0x12000, scoped, tag = 'internal scratch']
  #allocation2 [shape = 'f32[1,1]{1,0:T(1,128)S(6)}', space=smem, size = 0x200, scoped, tag = 'scoped memory for value_network_forward.1']
  %s0 = inlined_call_operand.vmem [shape: f32[304,16], index: 0, kind: input, shape index: {}]
  %s1 = inlined_call_operand.vmem [shape: f32[16,128], index: 1, kind: input, shape index: {}]
  %s2 = inlined_call_operand.vmem [shape: f32[2,128], index: 2, kind: input, shape index: {}]
  %s3 = inlined_call_operand.vmem [shape: f32[128,128], index: 3, kind: input, shape index: {}]
  %s4 = inlined_call_operand.vmem [shape: f32[1,128], index: 4, kind: input, shape index: {}]
  %s5 = inlined_call_operand.<no memory space> [shape: f32[1,1], index: 5, kind: input, shape index: {}]
  %s6 = inlined_call_operand.vmem [shape: f32[304,1], index: 6, kind: output, shape index: {}]
  %s7 = sld [smem:[#allocation0]]
  $region34: #{value_network_forward.1} parent=0
    _
  %s9 = ssub.s32 1, %s7
  %s10 = scalar_select 0, %s9, %s7
  %11 = sst [smem:[#allocation2]] %s5
  // Predicated region
  $region2: #{value_network_forward.1} parent=0 // pred_check
    _
  $region3: #{value_network_forward.1} parent=0 // pred_check_branch
    %13 = sbr.rel (0) target = $region5
  $region4: #{value_network_forward.1} parent=0 // pred_region
    _
  $region5: #{value_network_forward.1} parent=0 // pred_fallthru
    _
  // Predicated region
  $region6: #{value_network_forward.1} parent=0 // pred_check
    _
  $region7: #{value_network_forward.1} parent=0 // pred_check_branch
    %15 = sbr.rel (0) target = $region9
  $region8: #{value_network_forward.1} parent=0 // pred_region
    _
  $region9: #{value_network_forward.1} parent=0 // pred_fallthru
    _
  // Predicated region
  $region10: #{value_network_forward.1} parent=0 // pred_check
    _
  $region11: #{value_network_forward.1} parent=0 // pred_check_branch
    %17 = sbr.rel (0) target = $region13
  $region12: #{value_network_forward.1} parent=0 // pred_region
    _
  $region13: #{value_network_forward.1} parent=0 // pred_fallthru
    _
  // Predicated region
  $region14: #{value_network_forward.1} parent=0 // pred_check
    _
  $region15: #{value_network_forward.1} parent=0 // pred_check_branch
    %19 = sbr.rel (0) target = $region17
  $region16: #{value_network_forward.1} parent=0 // pred_region
    _
  $region17: #{value_network_forward.1} parent=0 // pred_fallthru
    _
  // Predicated region
  $region18: #{value_network_forward.1} parent=0 // pred_check
    _
  $region19: #{value_network_forward.1} parent=0 // pred_check_branch
    %21 = sbr.rel (0) target = $region21
  $region20: #{value_network_forward.1} parent=0 // pred_region
    _
  $region21: #{value_network_forward.1} parent=0 // pred_fallthru
    _
  // Predicated region
  $region22: #{value_network_forward.1} parent=0 // pred_check
    _
  $region23: #{value_network_forward.1} parent=0 // pred_check_branch
    %23 = sbr.rel (0) target = $region25
  $region24: #{value_network_forward.1} parent=0 // pred_region
    _
  $region25: #{value_network_forward.1} parent=0 // pred_fallthru
    _
  %v24 = vld [vmem:[%s0] sm:$0xff]
  %v25 = vld [vmem:[%s0 + $0x8] sm:$0xff]
  %v26 = vld [vmem:[%s0 + $0x10] sm:$0xff]
  %v27 = vld [vmem:[%s0 + $0x18] sm:$0xff]
  %v28 = vld [vmem:[%s0 + $0x20] sm:$0xff]
  %v29 = vld [vmem:[%s0 + $0x28] sm:$0xff]
  %v30 = vld [vmem:[%s0 + $0x30] sm:$0xff]
  %v31 = vld [vmem:[%s0 + $0x38] sm:$0xff]
  %v32 = vld [vmem:[%s0 + $0x40] sm:$0xff]
  %v33 = vld [vmem:[%s0 + $0x48] sm:$0xff]
  %v34 = vld [vmem:[%s0 + $0x50] sm:$0xff]
  %v35 = vld [vmem:[%s0 + $0x58] sm:$0xff]
  %v36 = vld [vmem:[%s0 + $0x60] sm:$0xff]
  %v37 = vld [vmem:[%s0 + $0x68] sm:$0xff]
  %v38 = vld [vmem:[%s0 + $0x70] sm:$0xff]
  %v39 = vld [vmem:[%s0 + $0x78] sm:$0xff]
  %v40 = vld [vmem:[%s0 + $0x80] sm:$0xff]
  %v41 = vld [vmem:[%s0 + $0x88] sm:$0xff]
  %v42 = vld [vmem:[%s0 + $0x90] sm:$0xff]
  %v43 = vld [vmem:[%s0 + $0x98] sm:$0xff]
  %v44 = vld [vmem:[%s0 + $0xa0] sm:$0xff]
  %v45 = vld [vmem:[%s0 + $0xa8] sm:$0xff]
  %v46 = vld [vmem:[%s0 + $0xb0] sm:$0xff]
  %v47 = vld [vmem:[%s0 + $0xb8] sm:$0xff]
  %v48 = vld [vmem:[%s0 + $0xc0] sm:$0xff]
  %v49 = vld [vmem:[%s0 + $0xc8] sm:$0xff]
  %v50 = vld [vmem:[%s0 + $0xd0] sm:$0xff]
  %v51 = vld [vmem:[%s0 + $0xd8] sm:$0xff]
  %v52 = vld [vmem:[%s0 + $0xe0] sm:$0xff]
  %v53 = vld [vmem:[%s0 + $0xe8] sm:$0xff]
  %v54 = vld [vmem:[%s0 + $0xf0] sm:$0xff]
  %v55 = vld [vmem:[%s0 + $0xf8] sm:$0xff]
  %v56 = vld [vmem:[%s0 + $0x100] sm:$0xff]
  %v57 = vld [vmem:[%s0 + $0x108] sm:$0xff]
  %v58 = vld [vmem:[%s0 + $0x110] sm:$0xff]
  %v59 = vld [vmem:[%s0 + $0x118] sm:$0xff]
  %v60 = vld [vmem:[%s0 + $0x120] sm:$0xff]
  %v61 = vld [vmem:[%s0 + $0x128] sm:$0xff]
  %v62 = vld [vmem:[%s1] sm:$0xff]
  %v63 = vld [vmem:[%s1 + $0x8] sm:$0xff]
  %v64 = vld [vmem:[%s2] sm:$0x1]
  %v65 = vlaneseq
  %v66 = vshrl.u32 %v65, 7
  %v67 = vsub.s32 0, %v66
  %v68 = vrot.slane %v64, %v67
  %vm69 = vcmask 130048
  %v71 = vsel %vm69, %v24, 0
  %v74 = vsel %vm69, %v25, 0
  %v77 = vsel %vm69, %v26, 0
  %v80 = vsel %vm69, %v27, 0
  %v83 = vsel %vm69, %v28, 0
  %v86 = vsel %vm69, %v29, 0
  %v89 = vsel %vm69, %v30, 0
  %v92 = vsel %vm69, %v31, 0
  %v95 = vsel %vm69, %v32, 0
  %v98 = vsel %vm69, %v33, 0
  %v101 = vsel %vm69, %v34, 0
  %v104 = vsel %vm69, %v35, 0
  %v107 = vsel %vm69, %v36, 0
  %v110 = vsel %vm69, %v37, 0
  %v113 = vsel %vm69, %v38, 0
  %v116 = vsel %vm69, %v39, 0
  %v119 = vsel %vm69, %v40, 0
  %v122 = vsel %vm69, %v41, 0
  %v125 = vsel %vm69, %v42, 0
  %v128 = vsel %vm69, %v43, 0
  %v131 = vsel %vm69, %v44, 0
  %v134 = vsel %vm69, %v45, 0
  %v137 = vsel %vm69, %v46, 0
  %v140 = vsel %vm69, %v47, 0
  %v143 = vsel %vm69, %v48, 0
  %v146 = vsel %vm69, %v49, 0
  %v149 = vsel %vm69, %v50, 0
  %v152 = vsel %vm69, %v51, 0
  %v155 = vsel %vm69, %v52, 0
  %v158 = vsel %vm69, %v53, 0
  %v161 = vsel %vm69, %v54, 0
  %v164 = vsel %vm69, %v55, 0
  %v167 = vsel %vm69, %v56, 0
  %v170 = vsel %vm69, %v57, 0
  %v173 = vsel %vm69, %v58, 0
  %v176 = vsel %vm69, %v59, 0
  %v179 = vsel %vm69, %v60, 0
  %v182 = vsel %vm69, %v61, 0
  %184 = vmatprep.subr.mxu0 0.0
  %185 = vmatpush1.msra.mxu0 %v62
  %186 = vmatprep.subr.mxu0 0.0
  %187 = vmatpush1.msra.mxu0 %v63
  %188 = vmatprep.subr.mxu0 0.0
  %189 = vmatpush1.msra.mxu0 0.0
  %190 = vmatprep.subr.mxu0 0.0
  %191 = vmatpush1.msra.mxu0 0.0
  %192 = vmatprep.subr.mxu0 0.0
  %193 = vmatpush1.msra.mxu0 0.0
  %194 = vmatprep.subr.mxu0 0.0
  %195 = vmatpush1.msra.mxu0 0.0
  %196 = vmatprep.subr.mxu0 0.0
  %197 = vmatpush1.msra.mxu0 0.0
  %198 = vmatprep.subr.mxu0 0.0
  %199 = vmatpush1.msra.mxu0 0.0
  %200 = vmatprep.subr.mxu0 0.0
  %201 = vmatpush1.msra.mxu0 0.0
  %202 = vmatprep.subr.mxu0 0.0
  %203 = vmatpush1.msra.mxu0 0.0
  %204 = vmatprep.subr.mxu0 0.0
  %205 = vmatpush1.msra.mxu0 0.0
  %206 = vmatprep.subr.mxu0 0.0
  %207 = vmatpush1.msra.mxu0 0.0
  %208 = vmatprep.subr.mxu0 0.0
  %209 = vmatpush1.msra.mxu0 0.0
  %210 = vmatprep.subr.mxu0 0.0
  %211 = vmatpush1.msra.mxu0 0.0
  %212 = vmatprep.subr.mxu0 0.0
  %213 = vmatpush1.msra.mxu0 0.0
  %214 = vmatprep.subr.mxu0 0.0
  %215 = vmatpush1.msra.mxu0 0.0
  %216 = vmatprep.subr.mxu0 0.0
  %217 = vmatpush1.msra.mxu0 0.0
  %218 = vmatprep.subr.mxu0 0.0
  %219 = vmatpush1.msra.mxu0 0.0
  %220 = vmatprep.subr.mxu0 0.0
  %221 = vmatpush1.msra.mxu0 0.0
  %222 = vmatprep.subr.mxu0 0.0
  %223 = vmatpush1.msra.mxu0 0.0
  %224 = vmatprep.subr.mxu0 0.0
  %225 = vmatpush1.msra.mxu0 0.0
  %226 = vmatprep.subr.mxu0 0.0
  %227 = vmatpush1.msra.mxu0 0.0
  %228 = vmatprep.subr.mxu0 0.0
  %229 = vmatpush1.msra.mxu0 0.0
  %230 = vmatprep.subr.mxu0 0.0
  %231 = vmatpush1.msra.mxu0 0.0
  %232 = vmatprep.subr.mxu0 0.0
  %233 = vmatpush1.msra.mxu0 0.0
  %234 = vmatprep.subr.mxu0 0.0
  %235 = vmatpush1.msra.mxu0 0.0
  %236 = vmatprep.subr.mxu0 0.0
  %237 = vmatpush1.msra.mxu0 0.0
  %238 = vmatprep.subr.mxu0 0.0
  %239 = vmatpush1.msra.mxu0 0.0
  %240 = vmatprep.subr.mxu0 0.0
  %241 = vmatpush1.msra.mxu0 0.0
  %242 = vmatprep.subr.mxu0 0.0
  %243 = vmatpush1.msra.mxu0 0.0
  %244 = vmatprep.subr.mxu0 0.0
  %245 = vmatpush1.msra.mxu0 0.0
  %246 = vmatprep.subr.mxu0 0.0
  %247 = vmatpush1.msra.mxu0 0.0
  %248 = vmatprep.mubr.f32.mxu0 0.0
  %249 = vmatmul.mubr.f32.gmra.mrb[0].mxu0 %v71
  %v250 = vpop.f32.mrb[0].mxu0
  %v251 = vadd.f32 %v68, %v250
  %v252 = vpop.f32.mrb[0].mxu0
  %253 = vmatprep.mubr.f32.mxu0 0.0
  %254 = vmatmul.mubr.f32.gmra.mrb[0].mxu0 %v74
  %v255 = vpop.f32.mrb[0].mxu0
  %v256 = vadd.f32 %v68, %v255
  %v257 = vpop.f32.mrb[0].mxu0
  %258 = vmatprep.mubr.f32.mxu0 0.0
  %259 = vmatmul.mubr.f32.gmra.mrb[0].mxu0 %v77
  %v260 = vpop.f32.mrb[0].mxu0
  %v261 = vadd.f32 %v68, %v260
  %v262 = vpop.f32.mrb[0].mxu0
  %263 = vmatprep.mubr.f32.mxu0 0.0
  %264 = vmatmul.mubr.f32.gmra.mrb[0].mxu0 %v80
  %v265 = vpop.f32.mrb[0].mxu0
  %v266 = vadd.f32 %v68, %v265
  %v267 = vpop.f32.mrb[0].mxu0
  %268 = vmatprep.mubr.f32.mxu0 0.0
  %269 = vmatmul.mubr.f32.gmra.mrb[0].mxu0 %v83
  %v270 = vpop.f32.mrb[0].mxu0
  %v271 = vadd.f32 %v68, %v270
  %v272 = vpop.f32.mrb[0].mxu0
  %273 = vmatprep.mubr.f32.mxu0 0.0
  %274 = vmatmul.mubr.f32.gmra.mrb[0].mxu0 %v86
  %v275 = vpop.f32.mrb[0].mxu0
  %v276 = vadd.f32 %v68, %v275
  %v277 = vpop.f32.mrb[0].mxu0
  %278 = vmatprep.mubr.f32.mxu0 0.0
  %279 = vmatmul.mubr.f32.gmra.mrb[0].mxu0 %v89
  %v280 = vpop.f32.mrb[0].mxu0
  %v281 = vadd.f32 %v68, %v280
  %v282 = vpop.f32.mrb[0].mxu0
  %283 = vmatprep.mubr.f32.mxu0 0.0
  %284 = vmatmul.mubr.f32.gmra.mrb[0].mxu0 %v92
  %v285 = vpop.f32.mrb[0].mxu0
  %v286 = vadd.f32 %v68, %v285
  %v287 = vpop.f32.mrb[0].mxu0
  %288 = vmatprep.mubr.f32.mxu0 0.0
  %289 = vmatmul.mubr.f32.gmra.mrb[0].mxu0 %v95
  %v290 = vpop.f32.mrb[0].mxu0
  %v291 = vadd.f32 %v68, %v290
  %v292 = vpop.f32.mrb[0].mxu0
  %293 = vmatprep.mubr.f32.mxu0 0.0
  %294 = vmatmul.mubr.f32.gmra.mrb[0].mxu0 %v98
  %v295 = vpop.f32.mrb[0].mxu0
  %v296 = vadd.f32 %v68, %v295
  %v297 = vpop.f32.mrb[0].mxu0
  %298 = vmatprep.mubr.f32.mxu0 0.0
  %299 = vmatmul.mubr.f32.gmra.mrb[0].mxu0 %v101
  %v300 = vpop.f32.mrb[0].mxu0
  %v301 = vadd.f32 %v68, %v300
  %v302 = vpop.f32.mrb[0].mxu0
  %303 = vmatprep.mubr.f32.mxu0 0.0
  %304 = vmatmul.mubr.f32.gmra.mrb[0].mxu0 %v104
  %v305 = vpop.f32.mrb[0].mxu0
  %v306 = vadd.f32 %v68, %v305
  %v307 = vpop.f32.mrb[0].mxu0
  %308 = vmatprep.mubr.f32.mxu0 0.0
  %309 = vmatmul.mubr.f32.gmra.mrb[0].mxu0 %v107
  %v310 = vpop.f32.mrb[0].mxu0
  %v311 = vadd.f32 %v68, %v310
  %v312 = vpop.f32.mrb[0].mxu0
  %313 = vmatprep.mubr.f32.mxu0 0.0
  %314 = vmatmul.mubr.f32.gmra.mrb[0].mxu0 %v110
  %v315 = vpop.f32.mrb[0].mxu0
  %v316 = vadd.f32 %v68, %v315
  %v317 = vpop.f32.mrb[0].mxu0
  %318 = vmatprep.mubr.f32.mxu0 0.0
  %319 = vmatmul.mubr.f32.gmra.mrb[0].mxu0 %v113
  %v320 = vpop.f32.mrb[0].mxu0
  %v321 = vadd.f32 %v68, %v320
  %v322 = vpop.f32.mrb[0].mxu0
  %323 = vmatprep.mubr.f32.mxu0 0.0
  %324 = vmatmul.mubr.f32.gmra.mrb[0].mxu0 %v116
  %v325 = vpop.f32.mrb[0].mxu0
  %v326 = vadd.f32 %v68, %v325
  %v327 = vpop.f32.mrb[0].mxu0
  %328 = vmatprep.mubr.f32.mxu0 0.0
  %329 = vmatmul.mubr.f32.gmra.mrb[0].mxu0 %v119
  %v330 = vpop.f32.mrb[0].mxu0
  %v331 = vadd.f32 %v68, %v330
  %v332 = vpop.f32.mrb[0].mxu0
  %333 = vmatprep.mubr.f32.mxu0 0.0
  %334 = vmatmul.mubr.f32.gmra.mrb[0].mxu0 %v122
  %v335 = vpop.f32.mrb[0].mxu0
  %v336 = vadd.f32 %v68, %v335
  %v337 = vpop.f32.mrb[0].mxu0
  %338 = vmatprep.mubr.f32.mxu0 0.0
  %339 = vmatmul.mubr.f32.gmra.mrb[0].mxu0 %v125
  %v340 = vpop.f32.mrb[0].mxu0
  %v341 = vadd.f32 %v68, %v340
  %v342 = vpop.f32.mrb[0].mxu0
  %343 = vmatprep.mubr.f32.mxu0 0.0
  %344 = vmatmul.mubr.f32.gmra.mrb[0].mxu0 %v128
  %v345 = vpop.f32.mrb[0].mxu0
  %v346 = vadd.f32 %v68, %v345
  %v347 = vpop.f32.mrb[0].mxu0
  %348 = vmatprep.mubr.f32.mxu0 0.0
  %349 = vmatmul.mubr.f32.gmra.mrb[0].mxu0 %v131
  %v350 = vpop.f32.mrb[0].mxu0
  %v351 = vadd.f32 %v68, %v350
  %v352 = vpop.f32.mrb[0].mxu0
  %353 = vmatprep.mubr.f32.mxu0 0.0
  %354 = vmatmul.mubr.f32.gmra.mrb[0].mxu0 %v134
  %v355 = vpop.f32.mrb[0].mxu0
  %v356 = vadd.f32 %v68, %v355
  %v357 = vpop.f32.mrb[0].mxu0
  %358 = vmatprep.mubr.f32.mxu0 0.0
  %359 = vmatmul.mubr.f32.gmra.mrb[0].mxu0 %v137
  %v360 = vpop.f32.mrb[0].mxu0
  %v361 = vadd.f32 %v68, %v360
  %v362 = vpop.f32.mrb[0].mxu0
  %363 = vmatprep.mubr.f32.mxu0 0.0
  %364 = vmatmul.mubr.f32.gmra.mrb[0].mxu0 %v140
  %v365 = vpop.f32.mrb[0].mxu0
  %v366 = vadd.f32 %v68, %v365
  %v367 = vpop.f32.mrb[0].mxu0
  %368 = vmatprep.mubr.f32.mxu0 0.0
  %369 = vmatmul.mubr.f32.gmra.mrb[0].mxu0 %v143
  %v370 = vpop.f32.mrb[0].mxu0
  %v371 = vadd.f32 %v68, %v370
  %v372 = vpop.f32.mrb[0].mxu0
  %373 = vmatprep.mubr.f32.mxu0 0.0
  %374 = vmatmul.mubr.f32.gmra.mrb[0].mxu0 %v146
  %v375 = vpop.f32.mrb[0].mxu0
  %v376 = vadd.f32 %v68, %v375
  %v377 = vpop.f32.mrb[0].mxu0
  %378 = vmatprep.mubr.f32.mxu0 0.0
  %379 = vmatmul.mubr.f32.gmra.mrb[0].mxu0 %v149
  %v380 = vpop.f32.mrb[0].mxu0
  %v381 = vadd.f32 %v68, %v380
  %v382 = vpop.f32.mrb[0].mxu0
  %383 = vmatprep.mubr.f32.mxu0 0.0
  %384 = vmatmul.mubr.f32.gmra.mrb[0].mxu0 %v152
  %v385 = vpop.f32.mrb[0].mxu0
  %v386 = vadd.f32 %v68, %v385
  %v387 = vpop.f32.mrb[0].mxu0
  %388 = vmatprep.mubr.f32.mxu0 0.0
  %389 = vmatmul.mubr.f32.gmra.mrb[0].mxu0 %v155
  %v390 = vpop.f32.mrb[0].mxu0
  %v391 = vadd.f32 %v68, %v390
  %v392 = vpop.f32.mrb[0].mxu0
  %393 = vmatprep.mubr.f32.mxu0 0.0
  %394 = vmatmul.mubr.f32.gmra.mrb[0].mxu0 %v158
  %v395 = vpop.f32.mrb[0].mxu0
  %v396 = vadd.f32 %v68, %v395
  %v397 = vpop.f32.mrb[0].mxu0
  %398 = vmatprep.mubr.f32.mxu0 0.0
  %399 = vmatmul.mubr.f32.gmra.mrb[0].mxu0 %v161
  %v400 = vpop.f32.mrb[0].mxu0
  %v401 = vadd.f32 %v68, %v400
  %v402 = vpop.f32.mrb[0].mxu0
  %403 = vmatprep.mubr.f32.mxu0 0.0
  %404 = vmatmul.mubr.f32.gmra.mrb[0].mxu0 %v164
  %v405 = vpop.f32.mrb[0].mxu0
  %v406 = vadd.f32 %v68, %v405
  %v407 = vpop.f32.mrb[0].mxu0
  %408 = vmatprep.mubr.f32.mxu0 0.0
  %409 = vmatmul.mubr.f32.gmra.mrb[0].mxu0 %v167
  %v410 = vpop.f32.mrb[0].mxu0
  %v411 = vadd.f32 %v68, %v410
  %v412 = vpop.f32.mrb[0].mxu0
  %413 = vmatprep.mubr.f32.mxu0 0.0
  %414 = vmatmul.mubr.f32.gmra.mrb[0].mxu0 %v170
  %v415 = vpop.f32.mrb[0].mxu0
  %v416 = vadd.f32 %v68, %v415
  %v417 = vpop.f32.mrb[0].mxu0
  %418 = vmatprep.mubr.f32.mxu0 0.0
  %419 = vmatmul.mubr.f32.gmra.mrb[0].mxu0 %v173
  %v420 = vpop.f32.mrb[0].mxu0
  %v421 = vadd.f32 %v68, %v420
  %v422 = vpop.f32.mrb[0].mxu0
  %423 = vmatprep.mubr.f32.mxu0 0.0
  %424 = vmatmul.mubr.f32.gmra.mrb[0].mxu0 %v176
  %v425 = vpop.f32.mrb[0].mxu0
  %v426 = vadd.f32 %v68, %v425
  %v427 = vpop.f32.mrb[0].mxu0
  %428 = vmatprep.mubr.f32.mxu0 0.0
  %429 = vmatmul.mubr.f32.gmra.mrb[0].mxu0 %v179
  %v430 = vpop.f32.mrb[0].mxu0
  %v431 = vadd.f32 %v68, %v430
  %v432 = vpop.f32.mrb[0].mxu0
  %433 = vmatprep.mubr.f32.mxu0 0.0
  %434 = vmatmul.mubr.f32.gmra.mrb[0].mxu0 %v182
  %v435 = vpop.f32.mrb[0].mxu0
  %v436 = vadd.f32 %v68, %v435
  %v437 = vpop.f32.mrb[0].mxu0
  %438 = vdwg.mxu0
  %v439 = vmax.f32 %v251, 0.0
  %v440 = vmax.f32 %v256, 0.0
  %v441 = vmax.f32 %v261, 0.0
  %v442 = vmax.f32 %v266, 0.0
  %v443 = vmax.f32 %v271, 0.0
  %v444 = vmax.f32 %v276, 0.0
  %v445 = vmax.f32 %v281, 0.0
  %v446 = vmax.f32 %v286, 0.0
  %v447 = vmax.f32 %v291, 0.0
  %v448 = vmax.f32 %v296, 0.0
  %v449 = vmax.f32 %v301, 0.0
  %v450 = vmax.f32 %v306, 0.0
  %v451 = vmax.f32 %v311, 0.0
  %v452 = vmax.f32 %v316, 0.0
  %v453 = vmax.f32 %v321, 0.0
  %v454 = vmax.f32 %v326, 0.0
  %v455 = vmax.f32 %v331, 0.0
  %v456 = vmax.f32 %v336, 0.0
  %v457 = vmax.f32 %v341, 0.0
  %v458 = vmax.f32 %v346, 0.0
  %v459 = vmax.f32 %v351, 0.0
  %v460 = vmax.f32 %v356, 0.0
  %v461 = vmax.f32 %v361, 0.0
  %v462 = vmax.f32 %v366, 0.0
  %v463 = vmax.f32 %v371, 0.0
  %v464 = vmax.f32 %v376, 0.0
  %v465 = vmax.f32 %v381, 0.0
  %v466 = vmax.f32 %v386, 0.0
  %v467 = vmax.f32 %v391, 0.0
  %v468 = vmax.f32 %v396, 0.0
  %v469 = vmax.f32 %v401, 0.0
  %v470 = vmax.f32 %v406, 0.0
  %v471 = vmax.f32 %v411, 0.0
  %v472 = vmax.f32 %v416, 0.0
  %v473 = vmax.f32 %v421, 0.0
  %v474 = vmax.f32 %v426, 0.0
  %v475 = vmax.f32 %v431, 0.0
  %v476 = vmax.f32 %v436, 0.0
  %v477 = vld [vmem:[%s3] sm:$0xff]
  %v478 = vld [vmem:[%s3 + $0x8] sm:$0xff]
  %v479 = vld [vmem:[%s3 + $0x10] sm:$0xff]
  %v480 = vld [vmem:[%s3 + $0x18] sm:$0xff]
  %v481 = vld [vmem:[%s3 + $0x20] sm:$0xff]
  %v482 = vld [vmem:[%s3 + $0x28] sm:$0xff]
  %v483 = vld [vmem:[%s3 + $0x30] sm:$0xff]
  %v484 = vld [vmem:[%s3 + $0x38] sm:$0xff]
  %v485 = vld [vmem:[%s3 + $0x40] sm:$0xff]
  %v486 = vld [vmem:[%s3 + $0x48] sm:$0xff]
  %v487 = vld [vmem:[%s3 + $0x50] sm:$0xff]
  %v488 = vld [vmem:[%s3 + $0x58] sm:$0xff]
  %v489 = vld [vmem:[%s3 + $0x60] sm:$0xff]
  %v490 = vld [vmem:[%s3 + $0x68] sm:$0xff]
  %v491 = vld [vmem:[%s3 + $0x70] sm:$0xff]
  %v492 = vld [vmem:[%s3 + $0x78] sm:$0xff]
  %v493 = vld [vmem:[%s2 + $0x1] sm:$0x1]
  %v494 = vlaneseq
  %v495 = vshrl.u32 %v494, 7
  %v496 = vsub.s32 0, %v495
  %v497 = vrot.slane %v493, %v496
  %498 = vmatprep.subr.mxu0 0.0
  %499 = vmatpush1.msra.mxu0 %v477
  %500 = vmatprep.subr.mxu0 0.0
  %501 = vmatpush1.msra.mxu0 %v478
  %502 = vmatprep.subr.mxu0 0.0
  %503 = vmatpush1.msra.mxu0 %v479
  %504 = vmatprep.subr.mxu0 0.0
  %505 = vmatpush1.msra.mxu0 %v480
  %506 = vmatprep.subr.mxu0 0.0
  %507 = vmatpush1.msra.mxu0 %v481
  %508 = vmatprep.subr.mxu0 0.0
  %509 = vmatpush1.msra.mxu0 %v482
  %510 = vmatprep.subr.mxu0 0.0
  %511 = vmatpush1.msra.mxu0 %v483
  %512 = vmatprep.subr.mxu0 0.0
  %513 = vmatpush1.msra.mxu0 %v484
  %514 = vmatprep.subr.mxu0 0.0
  %515 = vmatpush1.msra.mxu0 %v485
  %516 = vmatprep.subr.mxu0 0.0
  %517 = vmatpush1.msra.mxu0 %v486
  %518 = vmatprep.subr.mxu0 0.0
  %519 = vmatpush1.msra.mxu0 %v487
  %520 = vmatprep.subr.mxu0 0.0
  %521 = vmatpush1.msra.mxu0 %v488
  %522 = vmatprep.subr.mxu0 0.0
  %523 = vmatpush1.msra.mxu0 %v489
  %524 = vmatprep.subr.mxu0 0.0
  %525 = vmatpush1.msra.mxu0 %v490
  %526 = vmatprep.subr.mxu0 0.0
  %527 = vmatpush1.msra.mxu0 %v491
  %528 = vmatprep.subr.mxu0 0.0
  %529 = vmatpush1.msra.mxu0 %v492
  %530 = vmatprep.subr.mxu0 0.0
  %531 = vmatpush1.msra.mxu0 0.0
  %532 = vmatprep.subr.mxu0 0.0
  %533 = vmatpush1.msra.mxu0 0.0
  %534 = vmatprep.subr.mxu0 0.0
  %535 = vmatpush1.msra.mxu0 0.0
  %536 = vmatprep.subr.mxu0 0.0
  %537 = vmatpush1.msra.mxu0 0.0
  %538 = vmatprep.subr.mxu0 0.0
  %539 = vmatpush1.msra.mxu0 0.0
  %540 = vmatprep.subr.mxu0 0.0
  %541 = vmatpush1.msra.mxu0 0.0
  %542 = vmatprep.subr.mxu0 0.0
  %543 = vmatpush1.msra.mxu0 0.0
  %544 = vmatprep.subr.mxu0 0.0
  %545 = vmatpush1.msra.mxu0 0.0
  %546 = vmatprep.subr.mxu0 0.0
  %547 = vmatpush1.msra.mxu0 0.0
  %548 = vmatprep.subr.mxu0 0.0
  %549 = vmatpush1.msra.mxu0 0.0
  %550 = vmatprep.subr.mxu0 0.0
  %551 = vmatpush1.msra.mxu0 0.0
  %552 = vmatprep.subr.mxu0 0.0
  %553 = vmatpush1.msra.mxu0 0.0
  %554 = vmatprep.subr.mxu0 0.0
  %555 = vmatpush1.msra.mxu0 0.0
  %556 = vmatprep.subr.mxu0 0.0
  %557 = vmatpush1.msra.mxu0 0.0
  %558 = vmatprep.subr.mxu0 0.0
  %559 = vmatpush1.msra.mxu0 0.0
  %560 = vmatprep.subr.mxu0 0.0
  %561 = vmatpush1.msra.mxu0 0.0
  %562 = vmatprep.mubr.f32.mxu0 0.0
  %563 = vmatmul.mubr.f32.gmra.mrb[0].mxu0 %v439
  %v564 = vpop.f32.mrb[0].mxu0
  %v565 = vadd.f32 %v497, %v564
  %v566 = vpop.f32.mrb[0].mxu0
  %567 = vmatprep.mubr.f32.mxu0 0.0
  %568 = vmatmul.mubr.f32.gmra.mrb[0].mxu0 %v440
  %v569 = vpop.f32.mrb[0].mxu0
  %v570 = vadd.f32 %v497, %v569
  %v571 = vpop.f32.mrb[0].mxu0
  %572 = vmatprep.mubr.f32.mxu0 0.0
  %573 = vmatmul.mubr.f32.gmra.mrb[0].mxu0 %v441
  %v574 = vpop.f32.mrb[0].mxu0
  %v575 = vadd.f32 %v497, %v574
  %v576 = vpop.f32.mrb[0].mxu0
  %577 = vmatprep.mubr.f32.mxu0 0.0
  %578 = vmatmul.mubr.f32.gmra.mrb[0].mxu0 %v442
  %v579 = vpop.f32.mrb[0].mxu0
  %v580 = vadd.f32 %v497, %v579
  %v581 = vpop.f32.mrb[0].mxu0
  %582 = vmatprep.mubr.f32.mxu0 0.0
  %583 = vmatmul.mubr.f32.gmra.mrb[0].mxu0 %v443
  %v584 = vpop.f32.mrb[0].mxu0
  %v585 = vadd.f32 %v497, %v584
  %v586 = vpop.f32.mrb[0].mxu0
  %587 = vmatprep.mubr.f32.mxu0 0.0
  %588 = vmatmul.mubr.f32.gmra.mrb[0].mxu0 %v444
  %v589 = vpop.f32.mrb[0].mxu0
  %v590 = vadd.f32 %v497, %v589
  %v591 = vpop.f32.mrb[0].mxu0
  %592 = vmatprep.mubr.f32.mxu0 0.0
  %593 = vmatmul.mubr.f32.gmra.mrb[0].mxu0 %v445
  %v594 = vpop.f32.mrb[0].mxu0
  %v595 = vadd.f32 %v497, %v594
  %v596 = vpop.f32.mrb[0].mxu0
  %597 = vmatprep.mubr.f32.mxu0 0.0
  %598 = vmatmul.mubr.f32.gmra.mrb[0].mxu0 %v446
  %v599 = vpop.f32.mrb[0].mxu0
  %v600 = vadd.f32 %v497, %v599
  %v601 = vpop.f32.mrb[0].mxu0
  %602 = vmatprep.mubr.f32.mxu0 0.0
  %603 = vmatmul.mubr.f32.gmra.mrb[0].mxu0 %v447
  %v604 = vpop.f32.mrb[0].mxu0
  %v605 = vadd.f32 %v497, %v604
  %v606 = vpop.f32.mrb[0].mxu0
  %607 = vmatprep.mubr.f32.mxu0 0.0
  %608 = vmatmul.mubr.f32.gmra.mrb[0].mxu0 %v448
  %v609 = vpop.f32.mrb[0].mxu0
  %v610 = vadd.f32 %v497, %v609
  %v611 = vpop.f32.mrb[0].mxu0
  %612 = vmatprep.mubr.f32.mxu0 0.0
  %613 = vmatmul.mubr.f32.gmra.mrb[0].mxu0 %v449
  %v614 = vpop.f32.mrb[0].mxu0
  %v615 = vadd.f32 %v497, %v614
  %v616 = vpop.f32.mrb[0].mxu0
  %617 = vmatprep.mubr.f32.mxu0 0.0
  %618 = vmatmul.mubr.f32.gmra.mrb[0].mxu0 %v450
  %v619 = vpop.f32.mrb[0].mxu0
  %v620 = vadd.f32 %v497, %v619
  %v621 = vpop.f32.mrb[0].mxu0
  %622 = vmatprep.mubr.f32.mxu0 0.0
  %623 = vmatmul.mubr.f32.gmra.mrb[0].mxu0 %v451
  %v624 = vpop.f32.mrb[0].mxu0
  %v625 = vadd.f32 %v497, %v624
  %v626 = vpop.f32.mrb[0].mxu0
  %627 = vmatprep.mubr.f32.mxu0 0.0
  %628 = vmatmul.mubr.f32.gmra.mrb[0].mxu0 %v452
  %v629 = vpop.f32.mrb[0].mxu0
  %v630 = vadd.f32 %v497, %v629
  %v631 = vpop.f32.mrb[0].mxu0
  %632 = vmatprep.mubr.f32.mxu0 0.0
  %633 = vmatmul.mubr.f32.gmra.mrb[0].mxu0 %v453
  %v634 = vpop.f32.mrb[0].mxu0
  %v635 = vadd.f32 %v497, %v634
  %v636 = vpop.f32.mrb[0].mxu0
  %637 = vmatprep.mubr.f32.mxu0 0.0
  %638 = vmatmul.mubr.f32.gmra.mrb[0].mxu0 %v454
  %v639 = vpop.f32.mrb[0].mxu0
  %v640 = vadd.f32 %v497, %v639
  %v641 = vpop.f32.mrb[0].mxu0
  %642 = vmatprep.mubr.f32.mxu0 0.0
  %643 = vmatmul.mubr.f32.gmra.mrb[0].mxu0 %v455
  %v644 = vpop.f32.mrb[0].mxu0
  %v645 = vadd.f32 %v497, %v644
  %v646 = vpop.f32.mrb[0].mxu0
  %647 = vmatprep.mubr.f32.mxu0 0.0
  %648 = vmatmul.mubr.f32.gmra.mrb[0].mxu0 %v456
  %v649 = vpop.f32.mrb[0].mxu0
  %v650 = vadd.f32 %v497, %v649
  %v651 = vpop.f32.mrb[0].mxu0
  %652 = vmatprep.mubr.f32.mxu0 0.0
  %653 = vmatmul.mubr.f32.gmra.mrb[0].mxu0 %v457
  %v654 = vpop.f32.mrb[0].mxu0
  %v655 = vadd.f32 %v497, %v654
  %v656 = vpop.f32.mrb[0].mxu0
  %657 = vmatprep.mubr.f32.mxu0 0.0
  %658 = vmatmul.mubr.f32.gmra.mrb[0].mxu0 %v458
  %v659 = vpop.f32.mrb[0].mxu0
  %v660 = vadd.f32 %v497, %v659
  %v661 = vpop.f32.mrb[0].mxu0
  %662 = vmatprep.mubr.f32.mxu0 0.0
  %663 = vmatmul.mubr.f32.gmra.mrb[0].mxu0 %v459
  %v664 = vpop.f32.mrb[0].mxu0
  %v665 = vadd.f32 %v497, %v664
  %v666 = vpop.f32.mrb[0].mxu0
  %667 = vmatprep.mubr.f32.mxu0 0.0
  %668 = vmatmul.mubr.f32.gmra.mrb[0].mxu0 %v460
  %v669 = vpop.f32.mrb[0].mxu0
  %v670 = vadd.f32 %v497, %v669
  %v671 = vpop.f32.mrb[0].mxu0
  %672 = vmatprep.mubr.f32.mxu0 0.0
  %673 = vmatmul.mubr.f32.gmra.mrb[0].mxu0 %v461
  %v674 = vpop.f32.mrb[0].mxu0
  %v675 = vadd.f32 %v497, %v674
  %v676 = vpop.f32.mrb[0].mxu0
  %677 = vmatprep.mubr.f32.mxu0 0.0
  %678 = vmatmul.mubr.f32.gmra.mrb[0].mxu0 %v462
  %v679 = vpop.f32.mrb[0].mxu0
  %v680 = vadd.f32 %v497, %v679
  %v681 = vpop.f32.mrb[0].mxu0
  %682 = vmatprep.mubr.f32.mxu0 0.0
  %683 = vmatmul.mubr.f32.gmra.mrb[0].mxu0 %v463
  %v684 = vpop.f32.mrb[0].mxu0
  %v685 = vadd.f32 %v497, %v684
  %v686 = vpop.f32.mrb[0].mxu0
  %687 = vmatprep.mubr.f32.mxu0 0.0
  %688 = vmatmul.mubr.f32.gmra.mrb[0].mxu0 %v464
  %v689 = vpop.f32.mrb[0].mxu0
  %v690 = vadd.f32 %v497, %v689
  %v691 = vpop.f32.mrb[0].mxu0
  %692 = vmatprep.mubr.f32.mxu0 0.0
  %693 = vmatmul.mubr.f32.gmra.mrb[0].mxu0 %v465
  %v694 = vpop.f32.mrb[0].mxu0
  %v695 = vadd.f32 %v497, %v694
  %v696 = vpop.f32.mrb[0].mxu0
  %697 = vmatprep.mubr.f32.mxu0 0.0
  %698 = vmatmul.mubr.f32.gmra.mrb[0].mxu0 %v466
  %v699 = vpop.f32.mrb[0].mxu0
  %v700 = vadd.f32 %v497, %v699
  %v701 = vpop.f32.mrb[0].mxu0
  %702 = vmatprep.mubr.f32.mxu0 0.0
  %703 = vmatmul.mubr.f32.gmra.mrb[0].mxu0 %v467
  %v704 = vpop.f32.mrb[0].mxu0
  %v705 = vadd.f32 %v497, %v704
  %v706 = vpop.f32.mrb[0].mxu0
  %707 = vmatprep.mubr.f32.mxu0 0.0
  %708 = vmatmul.mubr.f32.gmra.mrb[0].mxu0 %v468
  %v709 = vpop.f32.mrb[0].mxu0
  %v710 = vadd.f32 %v497, %v709
  %v711 = vpop.f32.mrb[0].mxu0
  %712 = vmatprep.mubr.f32.mxu0 0.0
  %713 = vmatmul.mubr.f32.gmra.mrb[0].mxu0 %v469
  %v714 = vpop.f32.mrb[0].mxu0
  %v715 = vadd.f32 %v497, %v714
  %v716 = vpop.f32.mrb[0].mxu0
  %717 = vmatprep.mubr.f32.mxu0 0.0
  %718 = vmatmul.mubr.f32.gmra.mrb[0].mxu0 %v470
  %v719 = vpop.f32.mrb[0].mxu0
  %v720 = vadd.f32 %v497, %v719
  %v721 = vpop.f32.mrb[0].mxu0
  %722 = vmatprep.mubr.f32.mxu0 0.0
  %723 = vmatmul.mubr.f32.gmra.mrb[0].mxu0 %v471
  %v724 = vpop.f32.mrb[0].mxu0
  %v725 = vadd.f32 %v497, %v724
  %v726 = vpop.f32.mrb[0].mxu0
  %727 = vmatprep.mubr.f32.mxu0 0.0
  %728 = vmatmul.mubr.f32.gmra.mrb[0].mxu0 %v472
  %v729 = vpop.f32.mrb[0].mxu0
  %v730 = vadd.f32 %v497, %v729
  %v731 = vpop.f32.mrb[0].mxu0
  %732 = vmatprep.mubr.f32.mxu0 0.0
  %733 = vmatmul.mubr.f32.gmra.mrb[0].mxu0 %v473
  %v734 = vpop.f32.mrb[0].mxu0
  %v735 = vadd.f32 %v497, %v734
  %v736 = vpop.f32.mrb[0].mxu0
  %737 = vmatprep.mubr.f32.mxu0 0.0
  %738 = vmatmul.mubr.f32.gmra.mrb[0].mxu0 %v474
  %v739 = vpop.f32.mrb[0].mxu0
  %v740 = vadd.f32 %v497, %v739
  %v741 = vpop.f32.mrb[0].mxu0
  %742 = vmatprep.mubr.f32.mxu0 0.0
  %743 = vmatmul.mubr.f32.gmra.mrb[0].mxu0 %v475
  %v744 = vpop.f32.mrb[0].mxu0
  %v745 = vadd.f32 %v497, %v744
  %v746 = vpop.f32.mrb[0].mxu0
  %747 = vmatprep.mubr.f32.mxu0 0.0
  %748 = vmatmul.mubr.f32.gmra.mrb[0].mxu0 %v476
  %v749 = vpop.f32.mrb[0].mxu0
  %v750 = vadd.f32 %v497, %v749
  %v751 = vpop.f32.mrb[0].mxu0
  %752 = vdwg.mxu0
  %v753 = vmax.f32 %v565, 0.0
  %v754 = vmax.f32 %v570, 0.0
  %v755 = vmax.f32 %v575, 0.0
  %v756 = vmax.f32 %v580, 0.0
  %v757 = vmax.f32 %v585, 0.0
  %v758 = vmax.f32 %v590, 0.0
  %v759 = vmax.f32 %v595, 0.0
  %v760 = vmax.f32 %v600, 0.0
  %v761 = vmax.f32 %v605, 0.0
  %v762 = vmax.f32 %v610, 0.0
  %v763 = vmax.f32 %v615, 0.0
  %v764 = vmax.f32 %v620, 0.0
  %v765 = vmax.f32 %v625, 0.0
  %v766 = vmax.f32 %v630, 0.0
  %v767 = vmax.f32 %v635, 0.0
  %v768 = vmax.f32 %v640, 0.0
  %v769 = vmax.f32 %v645, 0.0
  %v770 = vmax.f32 %v650, 0.0
  %v771 = vmax.f32 %v655, 0.0
  %v772 = vmax.f32 %v660, 0.0
  %v773 = vmax.f32 %v665, 0.0
  %v774 = vmax.f32 %v670, 0.0
  %v775 = vmax.f32 %v675, 0.0
  %v776 = vmax.f32 %v680, 0.0
  %v777 = vmax.f32 %v685, 0.0
  %v778 = vmax.f32 %v690, 0.0
  %v779 = vmax.f32 %v695, 0.0
  %v780 = vmax.f32 %v700, 0.0
  %v781 = vmax.f32 %v705, 0.0
  %v782 = vmax.f32 %v710, 0.0
  %v783 = vmax.f32 %v715, 0.0
  %v784 = vmax.f32 %v720, 0.0
  %v785 = vmax.f32 %v725, 0.0
  %v786 = vmax.f32 %v730, 0.0
  %v787 = vmax.f32 %v735, 0.0
  %v788 = vmax.f32 %v740, 0.0
  %v789 = vmax.f32 %v745, 0.0
  %v790 = vmax.f32 %v750, 0.0
  %v791 = vld [vmem:[%s4] sm:$0x1]
  %v793 = vlaneseq
  %v794 = vshrl.u32 %v793, 7
  %v795 = vsub.s32 0, %v794
  %v796 = vrot.slane %v791, %v795
  %v798 = vmul.f32 %v753, %v796
  %v799 = vmul.f32 %v754, %v796
  %v800 = vmul.f32 %v755, %v796
  %v801 = vmul.f32 %v756, %v796
  %v802 = vmul.f32 %v757, %v796
  %v803 = vmul.f32 %v758, %v796
  %v804 = vmul.f32 %v759, %v796
  %v805 = vmul.f32 %v760, %v796
  %v806 = vmul.f32 %v761, %v796
  %v807 = vmul.f32 %v762, %v796
  %v808 = vmul.f32 %v763, %v796
  %v809 = vmul.f32 %v764, %v796
  %v810 = vmul.f32 %v765, %v796
  %v811 = vmul.f32 %v766, %v796
  %v812 = vmul.f32 %v767, %v796
  %v813 = vmul.f32 %v768, %v796
  %v814 = vmul.f32 %v769, %v796
  %v815 = vmul.f32 %v770, %v796
  %v816 = vmul.f32 %v771, %v796
  %v817 = vmul.f32 %v772, %v796
  %v818 = vmul.f32 %v773, %v796
  %v819 = vmul.f32 %v774, %v796
  %v820 = vmul.f32 %v775, %v796
  %v821 = vmul.f32 %v776, %v796
  %v822 = vmul.f32 %v777, %v796
  %v823 = vmul.f32 %v778, %v796
  %v824 = vmul.f32 %v779, %v796
  %v825 = vmul.f32 %v780, %v796
  %v826 = vmul.f32 %v781, %v796
  %v827 = vmul.f32 %v782, %v796
  %v828 = vmul.f32 %v783, %v796
  %v829 = vmul.f32 %v784, %v796
  %v830 = vmul.f32 %v785, %v796
  %v831 = vmul.f32 %v786, %v796
  %v832 = vmul.f32 %v787, %v796
  %v833 = vmul.f32 %v788, %v796
  %v834 = vmul.f32 %v789, %v796
  %v835 = vmul.f32 %v790, %v796
  %836 = vadd.xlane.f32.xlu0 %v798
  %v837 = vpop.xlane.xlu0 %836
  %838 = vadd.xlane.f32.xlu0 %v799
  %v839 = vpop.xlane.xlu0 %838
  %840 = vadd.xlane.f32.xlu0 %v800
  %v841 = vpop.xlane.xlu0 %840
  %842 = vadd.xlane.f32.xlu0 %v801
  %v843 = vpop.xlane.xlu0 %842
  %844 = vadd.xlane.f32.xlu0 %v802
  %v845 = vpop.xlane.xlu0 %844
  %846 = vadd.xlane.f32.xlu0 %v803
  %v847 = vpop.xlane.xlu0 %846
  %848 = vadd.xlane.f32.xlu0 %v804
  %v849 = vpop.xlane.xlu0 %848
  %850 = vadd.xlane.f32.xlu0 %v805
  %v851 = vpop.xlane.xlu0 %850
  %852 = vadd.xlane.f32.xlu0 %v806
  %v853 = vpop.xlane.xlu0 %852
  %854 = vadd.xlane.f32.xlu0 %v807
  %v855 = vpop.xlane.xlu0 %854
  %856 = vadd.xlane.f32.xlu0 %v808
  %v857 = vpop.xlane.xlu0 %856
  %858 = vadd.xlane.f32.xlu0 %v809
  %v859 = vpop.xlane.xlu0 %858
  %860 = vadd.xlane.f32.xlu0 %v810
  %v861 = vpop.xlane.xlu0 %860
  %862 = vadd.xlane.f32.xlu0 %v811
  %v863 = vpop.xlane.xlu0 %862
  %864 = vadd.xlane.f32.xlu0 %v812
  %v865 = vpop.xlane.xlu0 %864
  %866 = vadd.xlane.f32.xlu0 %v813
  %v867 = vpop.xlane.xlu0 %866
  %868 = vadd.xlane.f32.xlu0 %v814
  %v869 = vpop.xlane.xlu0 %868
  %870 = vadd.xlane.f32.xlu0 %v815
  %v871 = vpop.xlane.xlu0 %870
  %872 = vadd.xlane.f32.xlu0 %v816
  %v873 = vpop.xlane.xlu0 %872
  %874 = vadd.xlane.f32.xlu0 %v817
  %v875 = vpop.xlane.xlu0 %874
  %876 = vadd.xlane.f32.xlu0 %v818
  %v877 = vpop.xlane.xlu0 %876
  %878 = vadd.xlane.f32.xlu0 %v819
  %v879 = vpop.xlane.xlu0 %878
  %880 = vadd.xlane.f32.xlu0 %v820
  %v881 = vpop.xlane.xlu0 %880
  %882 = vadd.xlane.f32.xlu0 %v821
  %v883 = vpop.xlane.xlu0 %882
  %884 = vadd.xlane.f32.xlu0 %v822
  %v885 = vpop.xlane.xlu0 %884
  %886 = vadd.xlane.f32.xlu0 %v823
  %v887 = vpop.xlane.xlu0 %886
  %888 = vadd.xlane.f32.xlu0 %v824
  %v889 = vpop.xlane.xlu0 %888
  %890 = vadd.xlane.f32.xlu0 %v825
  %v891 = vpop.xlane.xlu0 %890
  %892 = vadd.xlane.f32.xlu0 %v826
  %v893 = vpop.xlane.xlu0 %892
  %894 = vadd.xlane.f32.xlu0 %v827
  %v895 = vpop.xlane.xlu0 %894
  %896 = vadd.xlane.f32.xlu0 %v828
  %v897 = vpop.xlane.xlu0 %896
  %898 = vadd.xlane.f32.xlu0 %v829
  %v899 = vpop.xlane.xlu0 %898
  %900 = vadd.xlane.f32.xlu0 %v830
  %v901 = vpop.xlane.xlu0 %900
  %902 = vadd.xlane.f32.xlu0 %v831
  %v903 = vpop.xlane.xlu0 %902
  %904 = vadd.xlane.f32.xlu0 %v832
  %v905 = vpop.xlane.xlu0 %904
  %906 = vadd.xlane.f32.xlu0 %v833
  %v907 = vpop.xlane.xlu0 %906
  %908 = vadd.xlane.f32.xlu0 %v834
  %v909 = vpop.xlane.xlu0 %908
  %910 = vadd.xlane.f32.xlu0 %v835
  %v911 = vpop.xlane.xlu0 %910
  %s912 = sld [smem:[#allocation2]]
  %v913 = vstv %s912
  %v914 = vadd.f32 %v837, %v913
  %v915 = vadd.f32 %v839, %v913
  %v916 = vadd.f32 %v841, %v913
  %v917 = vadd.f32 %v843, %v913
  %v918 = vadd.f32 %v845, %v913
  %v919 = vadd.f32 %v847, %v913
  %v920 = vadd.f32 %v849, %v913
  %v921 = vadd.f32 %v851, %v913
  %v922 = vadd.f32 %v853, %v913
  %v923 = vadd.f32 %v855, %v913
  %v924 = vadd.f32 %v857, %v913
  %v925 = vadd.f32 %v859, %v913
  %v926 = vadd.f32 %v861, %v913
  %v927 = vadd.f32 %v863, %v913
  %v928 = vadd.f32 %v865, %v913
  %v929 = vadd.f32 %v867, %v913
  %v930 = vadd.f32 %v869, %v913
  %v931 = vadd.f32 %v871, %v913
  %v932 = vadd.f32 %v873, %v913
  %v933 = vadd.f32 %v875, %v913
  %v934 = vadd.f32 %v877, %v913
  %v935 = vadd.f32 %v879, %v913
  %v936 = vadd.f32 %v881, %v913
  %v937 = vadd.f32 %v883, %v913
  %v938 = vadd.f32 %v885, %v913
  %v939 = vadd.f32 %v887, %v913
  %v940 = vadd.f32 %v889, %v913
  %v941 = vadd.f32 %v891, %v913
  %v942 = vadd.f32 %v893, %v913
  %v943 = vadd.f32 %v895, %v913
  %v944 = vadd.f32 %v897, %v913
  %v945 = vadd.f32 %v899, %v913
  %v946 = vadd.f32 %v901, %v913
  %v947 = vadd.f32 %v903, %v913
  %v948 = vadd.f32 %v905, %v913
  %v949 = vadd.f32 %v907, %v913
  %v950 = vadd.f32 %v909, %v913
  %v951 = vadd.f32 %v911, %v913
  %vm952 = vcmask 7168
  %953 = vst.msk [vmem:[%s6] sm:$0xff] %vm952, %v914
  %954 = vst.msk [vmem:[%s6 + $0x8] sm:$0xff] %vm952, %v915
  %955 = vst.msk [vmem:[%s6 + $0x10] sm:$0xff] %vm952, %v916
  %956 = vst.msk [vmem:[%s6 + $0x18] sm:$0xff] %vm952, %v917
  %957 = vst.msk [vmem:[%s6 + $0x20] sm:$0xff] %vm952, %v918
  %958 = vst.msk [vmem:[%s6 + $0x28] sm:$0xff] %vm952, %v919
  %959 = vst.msk [vmem:[%s6 + $0x30] sm:$0xff] %vm952, %v920
  %960 = vst.msk [vmem:[%s6 + $0x38] sm:$0xff] %vm952, %v921
  %961 = vst.msk [vmem:[%s6 + $0x40] sm:$0xff] %vm952, %v922
  %962 = vst.msk [vmem:[%s6 + $0x48] sm:$0xff] %vm952, %v923
  %963 = vst.msk [vmem:[%s6 + $0x50] sm:$0xff] %vm952, %v924
  %964 = vst.msk [vmem:[%s6 + $0x58] sm:$0xff] %vm952, %v925
  %965 = vst.msk [vmem:[%s6 + $0x60] sm:$0xff] %vm952, %v926
  %966 = vst.msk [vmem:[%s6 + $0x68] sm:$0xff] %vm952, %v927
  %967 = vst.msk [vmem:[%s6 + $0x70] sm:$0xff] %vm952, %v928
  %968 = vst.msk [vmem:[%s6 + $0x78] sm:$0xff] %vm952, %v929
  %969 = vst.msk [vmem:[%s6 + $0x80] sm:$0xff] %vm952, %v930
  %970 = vst.msk [vmem:[%s6 + $0x88] sm:$0xff] %vm952, %v931
  %971 = vst.msk [vmem:[%s6 + $0x90] sm:$0xff] %vm952, %v932
  %972 = vst.msk [vmem:[%s6 + $0x98] sm:$0xff] %vm952, %v933
  %973 = vst.msk [vmem:[%s6 + $0xa0] sm:$0xff] %vm952, %v934
  %974 = vst.msk [vmem:[%s6 + $0xa8] sm:$0xff] %vm952, %v935
  %975 = vst.msk [vmem:[%s6 + $0xb0] sm:$0xff] %vm952, %v936
  %976 = vst.msk [vmem:[%s6 + $0xb8] sm:$0xff] %vm952, %v937
  %977 = vst.msk [vmem:[%s6 + $0xc0] sm:$0xff] %vm952, %v938
  %978 = vst.msk [vmem:[%s6 + $0xc8] sm:$0xff] %vm952, %v939
  %979 = vst.msk [vmem:[%s6 + $0xd0] sm:$0xff] %vm952, %v940
  %980 = vst.msk [vmem:[%s6 + $0xd8] sm:$0xff] %vm952, %v941
  %981 = vst.msk [vmem:[%s6 + $0xe0] sm:$0xff] %vm952, %v942
  %982 = vst.msk [vmem:[%s6 + $0xe8] sm:$0xff] %vm952, %v943
  %983 = vst.msk [vmem:[%s6 + $0xf0] sm:$0xff] %vm952, %v944
  %984 = vst.msk [vmem:[%s6 + $0xf8] sm:$0xff] %vm952, %v945
  %985 = vst.msk [vmem:[%s6 + $0x100] sm:$0xff] %vm952, %v946
  %986 = vst.msk [vmem:[%s6 + $0x108] sm:$0xff] %vm952, %v947
  %987 = vst.msk [vmem:[%s6 + $0x110] sm:$0xff] %vm952, %v948
  %988 = vst.msk [vmem:[%s6 + $0x118] sm:$0xff] %vm952, %v949
  %989 = vst.msk [vmem:[%s6 + $0x120] sm:$0xff] %vm952, %v950
  %990 = vst.msk [vmem:[%s6 + $0x128] sm:$0xff] %vm952, %v951
  // Predicated region
  $region26: #{value_network_forward.1} parent=0 // pred_check
    _
  $region27: #{value_network_forward.1} parent=0 // pred_check_branch
    %992 = sbr.rel (0) target = $region29
  $region28: #{value_network_forward.1} parent=0 // pred_region
    _
  $region29: #{value_network_forward.1} parent=0 // pred_fallthru
    _
  // Predicated region
  $region30: #{value_network_forward.1} parent=0 // pred_check
    _
  $region31: #{value_network_forward.1} parent=0 // pred_check_branch
    %994 = sbr.rel (0) target = $region33
  $region32: #{value_network_forward.1} parent=0 // pred_region
    _
  $region33: #{value_network_forward.1} parent=0 // pred_fallthru
    _

</llo_original>
